<compile_context>
chip_gen: v7x
topology: tpu7x:2x2x1
jax: 0.10.0
libtpu: 0.0.40
codegen_flags: <defaults>
</compile_context>

<pallas_src>
import functools
import math

import jax
import jax.numpy as jnp
from jax.experimental import pallas as pl
from jax.experimental.pallas import tpu as pltpu


def _round_up(x, m):
    return ((x + m - 1) // m) * m


def duel_dqn_kernel(x_ref, wb_ref, bb_ref, wh_ref, bh_ref, out_ref, *, act_size):
    # base linear + relu (MXU matmul, f32 accumulate; bias/relu in f32).
    # Cast of the x tile to the weight dtype happens here (free VPU op),
    # not in the wrapper (which would be an extra HBM pass).
    x = x_ref[...].astype(wb_ref.dtype)                                   # (TB, obs)
    h = jnp.dot(x, wb_ref[...], preferred_element_type=jnp.float32) + bb_ref[...]
    h = jnp.maximum(h, 0.0)                                               # (TB, hid_pad) f32

    # fused heads: columns [0:act] = adv, column act = val, columns > act = 0 pad
    heads = jnp.dot(h.astype(wh_ref.dtype), wh_ref[...],
                    preferred_element_type=jnp.float32) + bh_ref[...]     # (TB, n_pad) f32

    n_pad = heads.shape[1]
    # (1, n_pad) iota broadcast in the compare — no full-tile i32 temporary.
    col = jax.lax.broadcasted_iota(jnp.int32, (1, n_pad), 1)
    adv = jnp.where(col < act_size, heads, 0.0)                           # zero val+pad cols
    adv_mean = jnp.sum(adv, axis=1, keepdims=True) * (1.0 / act_size)     # true-act mean
    val = heads[:, act_size:act_size + 1]                                 # static slice (act_size is Python int)

    # padded columns carry (val - adv_mean); they are sliced off outside the kernel.
    out_ref[...] = (val + adv - adv_mean).astype(out_ref.dtype)


def pack_params(params, compute_dtype=jnp.float32):
    """Fuse value + advantage heads and pad both hid and the fused head width
    to multiples of 128 (lane-dense layouts, unmasked MXU passes).

    params = (wb, bb, wv, bv, wa, ba); weights stored [in, out], biases [1, out].
    Returns ((wb, bb, w_heads, b_heads), act_size).  Weights are cast to
    `compute_dtype` (bf16 is safe on v5e / v6e / v7x — the MXU is bf16-native
    and accumulation stays f32); biases stay f32.
    """
    wb, bb, wv, bv, wa, ba = params
    obs, hid = wb.shape
    act = wa.shape[1]
    hid_pad = _round_up(hid, 128)
    n_pad = _round_up(act + 1, 128)

    wb_p = jnp.zeros((obs, hid_pad), jnp.float32).at[:, :hid].set(wb)
    bb_p = jnp.zeros((1, hid_pad), jnp.float32).at[:, :hid].set(bb)

    wh = jnp.zeros((hid_pad, n_pad), jnp.float32)
    wh = wh.at[:hid, :act].set(wa).at[:hid, act:act + 1].set(wv)
    bh = jnp.zeros((1, n_pad), jnp.float32)
    bh = bh.at[:, :act].set(ba).at[:, act:act + 1].set(bv)

    packed = (wb_p.astype(compute_dtype), bb_p.astype(jnp.float32),
              wh.astype(compute_dtype), bh.astype(jnp.float32))
    return packed, act


def duel_dqn_forward(x, packed, act_size, *, batch_tile=None, out_dtype=jnp.float32):
    wb, bb, wh, bh = packed
    B, obs = x.shape
    hid_pad = wb.shape[1]
    n_pad = wh.shape[1]

    # Batch tiling heuristic:
    #  * tiny batches  (B <= 16): one full-array tile, zero padding, 1 step.
    #  * medium batches: split into 2 tiles (8-row aligned) so v7x's 2
    #    TensorCores both get work via the "parallel" grid axis.
    #  * big batches: 2048-row tiles — only a few MiB of VMEM even with
    #    double-buffered x/out, far fewer per-grid-step overheads than 256.
    if batch_tile is None:
        big = 2048
        if B >= 2 * big:
            batch_tile = big
        elif B > 16:
            batch_tile = _round_up((B + 1) // 2, 8)
        else:
            batch_tile = B
    b_pad = _round_up(B, batch_tile)

    # No dtype cast here (in-kernel cast instead); pad only when the tile does
    # not divide B (pick batch_tile dividing B to avoid this copy entirely).
    x_in = x if b_pad == B else jnp.pad(x, ((0, b_pad - B), (0, 0)))

    grid = (b_pad // batch_tile,)

    x_item = x.dtype.itemsize
    w_item = wb.dtype.itemsize
    out_item = jnp.dtype(out_dtype).itemsize

    # Explicit VMEM budget: resident weights + double-buffered x/out tiles +
    # in-flight f32 temporaries (h, heads, adv).  v5e's default scoped limit is
    # only 16 MiB, so set it explicitly; cap at 64 MiB (v7x physical VMEM).
    weight_bytes = (wb.size + wh.size) * w_item + (bb.size + bh.size) * 4
    stream_bytes = 2 * batch_tile * (obs * x_item + n_pad * out_item)
    temp_bytes = batch_tile * (hid_pad + 2 * n_pad) * 4
    vmem_limit = min(max(2 * (weight_bytes + stream_bytes + temp_bytes),
                         32 * 1024 * 1024),
                     64 * 1024 * 1024)

    flops = 2 * b_pad * (obs * hid_pad + hid_pad * n_pad)
    bytes_accessed = (x_in.size * x_item + weight_bytes + b_pad * n_pad * out_item)

    out = pl.pallas_call(
        functools.partial(duel_dqn_kernel, act_size=act_size),
        out_shape=jax.ShapeDtypeStruct((b_pad, n_pad), out_dtype),
        grid_spec=pltpu.PrefetchScalarGridSpec(
            num_scalar_prefetch=0,
            grid=grid,
            in_specs=[
                pl.BlockSpec((batch_tile, obs), lambda i: (i, 0)),  # x tiles pipeline
                pl.BlockSpec(wb.shape, lambda i: (0, 0)),           # weights resident
                pl.BlockSpec(bb.shape, lambda i: (0, 0)),
                pl.BlockSpec(wh.shape, lambda i: (0, 0)),
                pl.BlockSpec(bh.shape, lambda i: (0, 0)),
            ],
            out_specs=pl.BlockSpec((batch_tile, n_pad), lambda i: (i, 0)),
        ),
        compiler_params=pltpu.CompilerParams(
            dimension_semantics=("parallel",),
            vmem_limit_bytes=vmem_limit),
        cost_estimate=pl.CostEstimate(
            flops=flops, transcendentals=0, bytes_accessed=bytes_accessed),
    )(x_in, wb, bb, wh, bh)

    # strip batch padding and the lane padding / value column
    return out[:B, :act_size]


def init_params(key, obs_size, act_size, hid_size):
    """PyTorch nn.Linear-style init: U(-1/sqrt(fan_in), 1/sqrt(fan_in)).
    Weights stored as [in, out] (transposed vs. torch), biases as [1, out]."""
    def linear(k, fan_in, fan_out):
        kw, kb = jax.random.split(k)
        bound = 1.0 / math.sqrt(fan_in)
        w = jax.random.uniform(kw, (fan_in, fan_out), jnp.float32, -bound, bound)
        b = jax.random.uniform(kb, (1, fan_out), jnp.float32, -bound, bound)
        return w, b

    k1, k2, k3 = jax.random.split(key, 3)
    wb, bb = linear(k1, obs_size, hid_size)
    wv, bv = linear(k2, hid_size, 1)
    wa, ba = linear(k3, hid_size, act_size)
    return wb, bb, wv, bv, wa, ba


def reference_forward(x, params):
    wb, bb, wv, bv, wa, ba = params
    h = jnp.maximum(x @ wb + bb, 0.0)
    val = h @ wv + bv
    adv = h @ wa + ba
    return val + (adv - jnp.mean(adv, axis=1, keepdims=True))


if __name__ == "__main__":
    # small, module-consistent shapes
    B, obs_size, act_size, hid_size = 2, 16, 4, 32

    key = jax.random.PRNGKey(0)
    kx, kp = jax.random.split(key)
    x = jax.random.normal(kx, (B, obs_size), jnp.float32)
    params = init_params(kp, obs_size, act_size, hid_size)
    ref = reference_forward(x, params)

    # f32 path — strict check vs pure-JAX reference
    packed_f32, act = pack_params(params, compute_dtype=jnp.float32)
    out = jax.block_until_ready(duel_dqn_forward(x, packed_f32, act))
    assert out.shape == (B, act_size)
    assert jnp.allclose(out, ref, atol=1e-5, rtol=1e-5), "f32 mismatch vs reference"

    # bf16 matmul-input path (valid on v5e/v6e/v7x): f32 accumulate + f32 tail
    packed_bf16, _ = pack_params(params, compute_dtype=jnp.bfloat16)
    out_bf16 = jax.block_until_ready(duel_dqn_forward(x, packed_bf16, act))
    assert out_bf16.shape == (B, act_size)
    assert jnp.allclose(out_bf16, ref, atol=5e-2, rtol=5e-2), "bf16 mismatch vs reference"

    # multi-tile batch (exercises the 2-step grid + ragged batch padding path)
    B2 = 40
    x2 = jax.random.normal(jax.random.PRNGKey(1), (B2, obs_size), jnp.float32)
    ref2 = reference_forward(x2, params)
    out2 = jax.block_until_ready(duel_dqn_forward(x2, packed_f32, act))
    assert out2.shape == (B2, act_size)
    assert jnp.allclose(out2, ref2, atol=1e-5, rtol=1e-5), "multi-tile mismatch vs reference"

    print("KERNEL_OK")
</pallas_src>

<mosaic_0001>
module attributes {stable_mosaic.version = 11 : i64} {
  func.func @duel_dqn_kernel(%arg0: i32, %arg1: memref<2x16xf32, #tpu.memory_space<vmem>>, %arg2: memref<16x128xf32, #tpu.memory_space<vmem>>, %arg3: memref<1x128xf32, #tpu.memory_space<vmem>>, %arg4: memref<128x128xf32, #tpu.memory_space<vmem>>, %arg5: memref<1x128xf32, #tpu.memory_space<vmem>>, %arg6: memref<2x128xf32, #tpu.memory_space<vmem>>) attributes {dimension_semantics = [#tpu.dimension_semantics<parallel>], iteration_bounds = array<i64: 1>, scalar_prefetch = 0 : i64, scratch_operands = 0 : i64, tpu.core_type = #tpu.core_type<tc>, window_params = [{transform_indices = @transform_0, window_bounds = array<i64: 2, 16>}, {pipeline_mode = #tpu.pipeline_mode<synchronous>, transform_indices = @transform_1, window_bounds = array<i64: 16, 128>}, {pipeline_mode = #tpu.pipeline_mode<synchronous>, transform_indices = @transform_2, window_bounds = array<i64: 1, 128>}, {pipeline_mode = #tpu.pipeline_mode<synchronous>, transform_indices = @transform_3, window_bounds = array<i64: 128, 128>}, {pipeline_mode = #tpu.pipeline_mode<synchronous>, transform_indices = @transform_4, window_bounds = array<i64: 1, 128>}, {transform_indices = @transform_5, window_bounds = array<i64: 2, 128>}]} {
    %c0 = arith.constant 0 : index
    %c0_0 = arith.constant 0 : index
    %0 = vector.load %arg1[%c0, %c0_0] : memref<2x16xf32, #tpu.memory_space<vmem>>, vector<2x16xf32>
    %c0_1 = arith.constant 0 : index
    %c0_2 = arith.constant 0 : index
    %1 = vector.load %arg2[%c0_1, %c0_2] : memref<16x128xf32, #tpu.memory_space<vmem>>, vector<16x128xf32>
    %cst = arith.constant dense<0.000000e+00> : vector<2x128xf32>
    %2 = tpu.matmul %0, %1, %cst {dimension_numbers = #tpu.dot_dimension_numbers<[1], [0], [0], [1], [0, 0, 1, 1], [], []>} : vector<2x16xf32>, vector<16x128xf32>, vector<2x128xf32> -> vector<2x128xf32>
    %c0_3 = arith.constant 0 : index
    %c0_4 = arith.constant 0 : index
    %3 = vector.load %arg3[%c0_3, %c0_4] : memref<1x128xf32, #tpu.memory_space<vmem>>, vector<1x128xf32>
    %4 = vector.broadcast %3 : vector<1x128xf32> to vector<2x128xf32>
    %5 = arith.addf %2, %4 : vector<2x128xf32>
    %cst_5 = arith.constant 0.000000e+00 : f32
    %6 = vector.broadcast %cst_5 : f32 to vector<2x128xf32>
    %7 = arith.maximumf %5, %6 : vector<2x128xf32>
    %c0_6 = arith.constant 0 : index
    %c0_7 = arith.constant 0 : index
    %8 = vector.load %arg4[%c0_6, %c0_7] : memref<128x128xf32, #tpu.memory_space<vmem>>, vector<128x128xf32>
    %cst_8 = arith.constant dense<0.000000e+00> : vector<2x128xf32>
    %9 = tpu.matmul %7, %8, %cst_8 {dimension_numbers = #tpu.dot_dimension_numbers<[1], [0], [0], [1], [0, 0, 1, 1], [], []>} : vector<2x128xf32>, vector<128x128xf32>, vector<2x128xf32> -> vector<2x128xf32>
    %c0_9 = arith.constant 0 : index
    %c0_10 = arith.constant 0 : index
    %10 = vector.load %arg5[%c0_9, %c0_10] : memref<1x128xf32, #tpu.memory_space<vmem>>, vector<1x128xf32>
    %11 = vector.broadcast %10 : vector<1x128xf32> to vector<2x128xf32>
    %12 = arith.addf %9, %11 : vector<2x128xf32>
    %13 = tpu.iota {dimensions = array<i32: 1>} : vector<1x128xi32>
    %c4_i32 = arith.constant 4 : i32
    %14 = vector.broadcast %c4_i32 : i32 to vector<1x128xi32>
    %15 = arith.cmpi slt, %13, %14 : vector<1x128xi32>
    %cst_11 = arith.constant 0.000000e+00 : f32
    %16 = vector.shape_cast %15 : vector<1x128xi1> to vector<1x128xi1>
    %17 = vector.broadcast %16 : vector<1x128xi1> to vector<2x128xi1>
    %18 = vector.broadcast %cst_11 : f32 to vector<2x128xf32>
    %19 = arith.select %17, %12, %18 : vector<2x128xi1>, vector<2x128xf32>
    %cst_12 = arith.constant dense<0.000000e+00> : vector<2xf32>
    %20 = vector.multi_reduction <add>, %19, %cst_12 [1] : vector<2x128xf32> to vector<2xf32>
    %21 = vector.shape_cast %20 : vector<2xf32> to vector<2x1xf32>
    %cst_13 = arith.constant 2.500000e-01 : f32
    %22 = vector.broadcast %cst_13 : f32 to vector<2x1xf32>
    %23 = arith.mulf %21, %22 : vector<2x1xf32>
    %24 = vector.extract_strided_slice %12 {offsets = [0, 4], sizes = [2, 1], strides = [1, 1]} : vector<2x128xf32> to vector<2x1xf32>
    %25 = vector.broadcast %24 : vector<2x1xf32> to vector<2x128xf32>
    %26 = arith.addf %25, %19 : vector<2x128xf32>
    %27 = vector.broadcast %23 : vector<2x1xf32> to vector<2x128xf32>
    %28 = arith.subf %26, %27 : vector<2x128xf32>
    %c0_14 = arith.constant 0 : index
    %c0_15 = arith.constant 0 : index
    %29 = vector.load %arg6[%c0_14, %c0_15] : memref<2x128xf32, #tpu.memory_space<vmem>>, vector<2x128xf32>
    tpu.vector_store %arg6[%c0_14, %c0_15], %28 {strides = array<i32>} : memref<2x128xf32, #tpu.memory_space<vmem>>, vector<2x128xf32>,
    return
  }
  func.func @transform_0(%arg0: i32) -> (i32, i32) {
    %c0_i32 = arith.constant 0 : i32
    %c0_i32_0 = arith.constant 0 : i32
    return %arg0, %c0_i32 : i32, i32
  }
  func.func @transform_1(%arg0: i32) -> (i32, i32) {
    %c0_i32 = arith.constant 0 : i32
    %c0_i32_0 = arith.constant 0 : i32
    %c0_i32_1 = arith.constant 0 : i32
    return %c0_i32, %c0_i32_0 : i32, i32
  }
  func.func @transform_2(%arg0: i32) -> (i32, i32) {
    %c0_i32 = arith.constant 0 : i32
    %c0_i32_0 = arith.constant 0 : i32
    %c0_i32_1 = arith.constant 0 : i32
    return %c0_i32, %c0_i32_0 : i32, i32
  }
  func.func @transform_3(%arg0: i32) -> (i32, i32) {
    %c0_i32 = arith.constant 0 : i32
    %c0_i32_0 = arith.constant 0 : i32
    %c0_i32_1 = arith.constant 0 : i32
    return %c0_i32, %c0_i32_0 : i32, i32
  }
  func.func @transform_4(%arg0: i32) -> (i32, i32) {
    %c0_i32 = arith.constant 0 : i32
    %c0_i32_0 = arith.constant 0 : i32
    %c0_i32_1 = arith.constant 0 : i32
    return %c0_i32, %c0_i32_0 : i32, i32
  }
  func.func @transform_5(%arg0: i32) -> (i32, i32) {
    %c0_i32 = arith.constant 0 : i32
    %c0_i32_0 = arith.constant 0 : i32
    return %arg0, %c0_i32 : i32, i32
  }
}

</mosaic_0001>

<llo_original>
// kernel: tpu_custom_call.1
$region0: #{tpu_custom_call.1}
  #allocation0 [shape = 'u32[]', space=smem, size = 0x4, offset = 0x4, fixed_abs, tag = 'smem constant byte address 0x4 - core index']
  #allocation1 [shape = 'u32[144,128]{1,0:T(1,128)}', space=vmem, size = 0x12000, scoped, tag = 'internal scratch']
  %s0 = inlined_call_operand.hbm [shape: f32[2,16], index: 0, kind: input, shape index: {}]
  %s1 = inlined_call_operand.hbm [shape: f32[16,128], index: 1, kind: input, shape index: {}]
  %s2 = inlined_call_operand.vmem [shape: f32[1,128], index: 2, kind: input, shape index: {}]
  %s3 = inlined_call_operand.hbm [shape: f32[128,128], index: 3, kind: input, shape index: {}]
  %s4 = inlined_call_operand.vmem [shape: f32[1,128], index: 4, kind: input, shape index: {}]
  %s5 = inlined_call_operand.hbm [shape: f32[2,128], index: 5, kind: output, shape index: {}]
  %s6 = sld [smem:[#allocation0]]
  $region42: #{tpu_custom_call.1} parent=0
    _
  %s8 = ssub.s32 1, %s6
  %s9 = scalar_select 0, %s8, %s6
  $region1: #{tpu_custom_call.1} parent=0
    #allocation2 [shape = 'u8[1024]{0}', space=vmem, size = 0x400, scoped, tag = 'input window, operand 0, single buffered']
    #allocation3 [shape = 's32[1]{0}', space=sflag, size = 0x4, scoped, tag = 'scoped memory for tpu_custom_call.1']
    #allocation4 [shape = 's32[1]{0}', space=sflag, size = 0x4, scoped, tag = 'scoped memory for tpu_custom_call.1']
    #allocation5 [shape = 'u8[8192]{0}', space=vmem, size = 0x2000, scoped, tag = 'input window, operand 1, single buffered']
    #allocation6 [shape = 's32[1]{0}', space=sflag, size = 0x4, scoped, tag = 'scoped memory for tpu_custom_call.1']
    #allocation7 [shape = 'u8[65536]{0}', space=vmem, size = 0x10000, scoped, tag = 'input window, operand 3, single buffered']
    #allocation8 [shape = 'u8[1024]{0}', space=vmem, size = 0x400, scoped, tag = 'output window, operand 0, single buffered']
    %10 = vsyncpa [#allocation3], 0
    %11 = vsyncpa [#allocation6], 0
    %12 = vsyncpa [#allocation4], 0
    // Predicated region
    $region2: #{tpu_custom_call.1} parent=1 // pred_check
      _
    $region3: #{tpu_custom_call.1} parent=1 // pred_check_branch
      %14 = sbr.rel (0) target = $region5
    $region4: #{tpu_custom_call.1} parent=1 // pred_region
      %s16 = ssub.s32 32, 32
      %17 = vsyncadd [#allocation3], %s16
      %s19 = sshll.u32 [#allocation2], 4
      %s20 = int_to_ptr.vmem [resolvable:$true] %s19
      %22 = dma.hbm_to_vmem [thread:$0]  %s0, 32, %s20, [#allocation3]
    $region5: #{tpu_custom_call.1} parent=1 // pred_fallthru
      _
    // Predicated region
    $region6: #{tpu_custom_call.1} parent=1 // pred_check
      _
    $region7: #{tpu_custom_call.1} parent=1 // pred_check_branch
      %24 = sbr.rel (0) target = $region9
    $region8: #{tpu_custom_call.1} parent=1 // pred_region
      %s26 = ssub.s32 256, 256
      %27 = vsyncadd [#allocation6], %s26
      %s28 = sshll.u32 [#allocation5], 4
      %s29 = int_to_ptr.vmem [resolvable:$true] %s28
      %34 = dma.hbm_to_vmem [thread:$0]  %s1, 256, %s29, [#allocation6], 128, 128, 8
    $region9: #{tpu_custom_call.1} parent=1 // pred_fallthru
      _
    // Predicated region
    $region10: #{tpu_custom_call.1} parent=1 // pred_check
      _
    $region11: #{tpu_custom_call.1} parent=1 // pred_check_branch
      %36 = sbr.rel (0) target = $region13
    $region12: #{tpu_custom_call.1} parent=1 // pred_region
      _
    $region13: #{tpu_custom_call.1} parent=1 // pred_fallthru
      _
    // Predicated region
    $region14: #{tpu_custom_call.1} parent=1 // pred_check
      _
    $region15: #{tpu_custom_call.1} parent=1 // pred_check_branch
      %38 = sbr.rel (0) target = $region17
    $region16: #{tpu_custom_call.1} parent=1 // pred_region
      %s40 = ssub.s32 2048, 2048
      %41 = vsyncadd [#allocation6], %s40
      %s42 = sshll.u32 [#allocation7], 4
      %s43 = int_to_ptr.vmem [resolvable:$true] %s42
      %48 = dma.hbm_to_vmem [thread:$0]  %s3, 2048, %s43, [#allocation6], 128, 128, 8
    $region17: #{tpu_custom_call.1} parent=1 // pred_fallthru
      _
    // Predicated region
    $region18: #{tpu_custom_call.1} parent=1 // pred_check
      _
    $region19: #{tpu_custom_call.1} parent=1 // pred_check_branch
      %50 = sbr.rel (0) target = $region21
    $region20: #{tpu_custom_call.1} parent=1 // pred_region
      _
    $region21: #{tpu_custom_call.1} parent=1 // pred_fallthru
      _
    // Predicated region
    $region22: #{tpu_custom_call.1} parent=1 // pred_check
      _
    $region23: #{tpu_custom_call.1} parent=1 // pred_check_branch
      %52 = sbr.rel (0) target = $region25
    $region24: #{tpu_custom_call.1} parent=1 // pred_region
      %53 = dma.done [#allocation3], 32
    $region25: #{tpu_custom_call.1} parent=1 // pred_fallthru
      _
    // Predicated region
    $region26: #{tpu_custom_call.1} parent=1 // pred_check
      _
    $region27: #{tpu_custom_call.1} parent=1 // pred_check_branch
      %55 = sbr.rel (0) target = $region29
    $region28: #{tpu_custom_call.1} parent=1 // pred_region
      %56 = dma.done [#allocation6], 256
    $region29: #{tpu_custom_call.1} parent=1 // pred_fallthru
      _
    // Predicated region
    $region30: #{tpu_custom_call.1} parent=1 // pred_check
      _
    $region31: #{tpu_custom_call.1} parent=1 // pred_check_branch
      %58 = sbr.rel (0) target = $region33
    $region32: #{tpu_custom_call.1} parent=1 // pred_region
      %59 = dma.done [#allocation6], 2048
    $region33: #{tpu_custom_call.1} parent=1 // pred_fallthru
      _
    %v60 = vld [vmem:[#allocation2] sm:$0x3]
    %v61 = vld [vmem:[#allocation5] sm:$0xff]
    %v62 = vld [vmem:[#allocation5 + $0x8] sm:$0xff]
    %v63 = vld [vmem:[%s2] sm:$0x1]
    %v65 = vlaneseq
    %v66 = vshrl.u32 %v65, 7
    %v67 = vsub.s32 0, %v66
    %v68 = vrot.slane %v63, %v67
    %vm70 = vcmask 130048
    %v72 = vsel %vm70, %v60, 0
    %74 = vmatprep.subr.mxu0 0.0
    %75 = vmatpush1.msra.mxu0 %v61
    %76 = vmatprep.subr.mxu0 0.0
    %77 = vmatpush1.msra.mxu0 %v62
    %78 = vmatprep.subr.mxu0 0.0
    %79 = vmatpush1.msra.mxu0 0.0
    %80 = vmatprep.subr.mxu0 0.0
    %81 = vmatpush1.msra.mxu0 0.0
    %82 = vmatprep.subr.mxu0 0.0
    %83 = vmatpush1.msra.mxu0 0.0
    %84 = vmatprep.subr.mxu0 0.0
    %85 = vmatpush1.msra.mxu0 0.0
    %86 = vmatprep.subr.mxu0 0.0
    %87 = vmatpush1.msra.mxu0 0.0
    %88 = vmatprep.subr.mxu0 0.0
    %89 = vmatpush1.msra.mxu0 0.0
    %90 = vmatprep.subr.mxu0 0.0
    %91 = vmatpush1.msra.mxu0 0.0
    %92 = vmatprep.subr.mxu0 0.0
    %93 = vmatpush1.msra.mxu0 0.0
    %94 = vmatprep.subr.mxu0 0.0
    %95 = vmatpush1.msra.mxu0 0.0
    %96 = vmatprep.subr.mxu0 0.0
    %97 = vmatpush1.msra.mxu0 0.0
    %98 = vmatprep.subr.mxu0 0.0
    %99 = vmatpush1.msra.mxu0 0.0
    %100 = vmatprep.subr.mxu0 0.0
    %101 = vmatpush1.msra.mxu0 0.0
    %102 = vmatprep.subr.mxu0 0.0
    %103 = vmatpush1.msra.mxu0 0.0
    %104 = vmatprep.subr.mxu0 0.0
    %105 = vmatpush1.msra.mxu0 0.0
    %106 = vmatprep.subr.mxu0 0.0
    %107 = vmatpush1.msra.mxu0 0.0
    %108 = vmatprep.subr.mxu0 0.0
    %109 = vmatpush1.msra.mxu0 0.0
    %110 = vmatprep.subr.mxu0 0.0
    %111 = vmatpush1.msra.mxu0 0.0
    %112 = vmatprep.subr.mxu0 0.0
    %113 = vmatpush1.msra.mxu0 0.0
    %114 = vmatprep.subr.mxu0 0.0
    %115 = vmatpush1.msra.mxu0 0.0
    %116 = vmatprep.subr.mxu0 0.0
    %117 = vmatpush1.msra.mxu0 0.0
    %118 = vmatprep.subr.mxu0 0.0
    %119 = vmatpush1.msra.mxu0 0.0
    %120 = vmatprep.subr.mxu0 0.0
    %121 = vmatpush1.msra.mxu0 0.0
    %122 = vmatprep.subr.mxu0 0.0
    %123 = vmatpush1.msra.mxu0 0.0
    %124 = vmatprep.subr.mxu0 0.0
    %125 = vmatpush1.msra.mxu0 0.0
    %126 = vmatprep.subr.mxu0 0.0
    %127 = vmatpush1.msra.mxu0 0.0
    %128 = vmatprep.subr.mxu0 0.0
    %129 = vmatpush1.msra.mxu0 0.0
    %130 = vmatprep.subr.mxu0 0.0
    %131 = vmatpush1.msra.mxu0 0.0
    %132 = vmatprep.subr.mxu0 0.0
    %133 = vmatpush1.msra.mxu0 0.0
    %134 = vmatprep.subr.mxu0 0.0
    %135 = vmatpush1.msra.mxu0 0.0
    %136 = vmatprep.subr.mxu0 0.0
    %137 = vmatpush1.msra.mxu0 0.0
    %138 = vmatprep.mubr.f32.mxu0 0.0
    %139 = vmatmul.mubr.f32.gmra.mrb[0].mxu0 %v72
    %v140 = vpop.f32.mrb[0].mxu0
    %v141 = vadd.f32 %v68, %v140
    %v142 = vpop.f32.mrb[0].mxu0
    %143 = vdwg.mxu0
    %v144 = vmax.f32 %v141, 0.0
    %v145 = vld [vmem:[#allocation7] sm:$0xff]
    %v146 = vld [vmem:[#allocation7 + $0x8] sm:$0xff]
    %v147 = vld [vmem:[#allocation7 + $0x10] sm:$0xff]
    %v148 = vld [vmem:[#allocation7 + $0x18] sm:$0xff]
    %v149 = vld [vmem:[#allocation7 + $0x20] sm:$0xff]
    %v150 = vld [vmem:[#allocation7 + $0x28] sm:$0xff]
    %v151 = vld [vmem:[#allocation7 + $0x30] sm:$0xff]
    %v152 = vld [vmem:[#allocation7 + $0x38] sm:$0xff]
    %v153 = vld [vmem:[#allocation7 + $0x40] sm:$0xff]
    %v154 = vld [vmem:[#allocation7 + $0x48] sm:$0xff]
    %v155 = vld [vmem:[#allocation7 + $0x50] sm:$0xff]
    %v156 = vld [vmem:[#allocation7 + $0x58] sm:$0xff]
    %v157 = vld [vmem:[#allocation7 + $0x60] sm:$0xff]
    %v158 = vld [vmem:[#allocation7 + $0x68] sm:$0xff]
    %v159 = vld [vmem:[#allocation7 + $0x70] sm:$0xff]
    %v160 = vld [vmem:[#allocation7 + $0x78] sm:$0xff]
    %v161 = vld [vmem:[%s4] sm:$0x1]
    %v163 = vlaneseq
    %v164 = vshrl.u32 %v163, 7
    %v165 = vsub.s32 0, %v164
    %v166 = vrot.slane %v161, %v165
    %168 = vmatprep.subr.mxu0 0.0
    %169 = vmatpush1.msra.mxu0 %v145
    %170 = vmatprep.subr.mxu0 0.0
    %171 = vmatpush1.msra.mxu0 %v146
    %172 = vmatprep.subr.mxu0 0.0
    %173 = vmatpush1.msra.mxu0 %v147
    %174 = vmatprep.subr.mxu0 0.0
    %175 = vmatpush1.msra.mxu0 %v148
    %176 = vmatprep.subr.mxu0 0.0
    %177 = vmatpush1.msra.mxu0 %v149
    %178 = vmatprep.subr.mxu0 0.0
    %179 = vmatpush1.msra.mxu0 %v150
    %180 = vmatprep.subr.mxu0 0.0
    %181 = vmatpush1.msra.mxu0 %v151
    %182 = vmatprep.subr.mxu0 0.0
    %183 = vmatpush1.msra.mxu0 %v152
    %184 = vmatprep.subr.mxu0 0.0
    %185 = vmatpush1.msra.mxu0 %v153
    %186 = vmatprep.subr.mxu0 0.0
    %187 = vmatpush1.msra.mxu0 %v154
    %188 = vmatprep.subr.mxu0 0.0
    %189 = vmatpush1.msra.mxu0 %v155
    %190 = vmatprep.subr.mxu0 0.0
    %191 = vmatpush1.msra.mxu0 %v156
    %192 = vmatprep.subr.mxu0 0.0
    %193 = vmatpush1.msra.mxu0 %v157
    %194 = vmatprep.subr.mxu0 0.0
    %195 = vmatpush1.msra.mxu0 %v158
    %196 = vmatprep.subr.mxu0 0.0
    %197 = vmatpush1.msra.mxu0 %v159
    %198 = vmatprep.subr.mxu0 0.0
    %199 = vmatpush1.msra.mxu0 %v160
    %200 = vmatprep.subr.mxu0 0.0
    %201 = vmatpush1.msra.mxu0 0.0
    %202 = vmatprep.subr.mxu0 0.0
    %203 = vmatpush1.msra.mxu0 0.0
    %204 = vmatprep.subr.mxu0 0.0
    %205 = vmatpush1.msra.mxu0 0.0
    %206 = vmatprep.subr.mxu0 0.0
    %207 = vmatpush1.msra.mxu0 0.0
    %208 = vmatprep.subr.mxu0 0.0
    %209 = vmatpush1.msra.mxu0 0.0
    %210 = vmatprep.subr.mxu0 0.0
    %211 = vmatpush1.msra.mxu0 0.0
    %212 = vmatprep.subr.mxu0 0.0
    %213 = vmatpush1.msra.mxu0 0.0
    %214 = vmatprep.subr.mxu0 0.0
    %215 = vmatpush1.msra.mxu0 0.0
    %216 = vmatprep.subr.mxu0 0.0
    %217 = vmatpush1.msra.mxu0 0.0
    %218 = vmatprep.subr.mxu0 0.0
    %219 = vmatpush1.msra.mxu0 0.0
    %220 = vmatprep.subr.mxu0 0.0
    %221 = vmatpush1.msra.mxu0 0.0
    %222 = vmatprep.subr.mxu0 0.0
    %223 = vmatpush1.msra.mxu0 0.0
    %224 = vmatprep.subr.mxu0 0.0
    %225 = vmatpush1.msra.mxu0 0.0
    %226 = vmatprep.subr.mxu0 0.0
    %227 = vmatpush1.msra.mxu0 0.0
    %228 = vmatprep.subr.mxu0 0.0
    %229 = vmatpush1.msra.mxu0 0.0
    %230 = vmatprep.subr.mxu0 0.0
    %231 = vmatpush1.msra.mxu0 0.0
    %232 = vmatprep.mubr.f32.mxu0 0.0
    %233 = vmatmul.mubr.f32.gmra.mrb[0].mxu0 %v144
    %v234 = vpop.f32.mrb[0].mxu0
    %v235 = vadd.f32 %v166, %v234
    %v236 = vpop.f32.mrb[0].mxu0
    %237 = vdwg.mxu0
    %v238 = vlaneseq
    %v239 = vand.u32 %v238, 127
    %vm240 = vcmp.lt.s32.totalorder %v239, 4
    %v241 = vsel %vm240, 1, 0
    %vm242 = vcmp.eq.s32.totalorder %v241, 1
    %v243 = vsel %vm242, %v235, 0.0
    %vm244 = vcmask 1041408
    %v245 = vsel %vm244, %v243, 0.0
    %246 = vadd.xlane.f32.xlu0 %v245
    %v247 = vpop.xlane.xlu0 %246
    %v248 = vmul.f32 %v247, 0.25
    %250 = vset.pattern.permute.xlu0 4
    %251 = vperm.xlu0 %250, %v235
    %v252 = vpop.permute.xlu0 %251
    %v254 = vadd.f32 %v252, %v243
    %v255 = vsub.f32 %v254, %v248
    %256 = vst [vmem:[#allocation8] sm:$0x3] %v255
    // Predicated region
    $region34: #{tpu_custom_call.1} parent=1 // pred_check
      _
    $region35: #{tpu_custom_call.1} parent=1 // pred_check_branch
      %258 = sbr.rel (0) target = $region37
    $region36: #{tpu_custom_call.1} parent=1 // pred_region
      %s260 = ssub.s32 32, 32
      %261 = vsyncadd [#allocation4], %s260
      %s263 = sshll.u32 [#allocation8], 4
      %s264 = int_to_ptr.vmem [resolvable:$true] %s263
      %266 = dma.vmem_to_hbm [thread:$0]  %s264, 32, %s5, [#allocation4]
    $region37: #{tpu_custom_call.1} parent=1 // pred_fallthru
      _
    // Predicated region
    $region38: #{tpu_custom_call.1} parent=1 // pred_check
      _
    $region39: #{tpu_custom_call.1} parent=1 // pred_check_branch
      %268 = sbr.rel (0) target = $region41
    $region40: #{tpu_custom_call.1} parent=1 // pred_region
      %269 = dma.done [#allocation4], 32
    $region41: #{tpu_custom_call.1} parent=1 // pred_fallthru
      _
    %270 = vsyncpa [#allocation3], 1
    %271 = vsyncpa [#allocation6], 1
    %272 = vsyncpa [#allocation4], 1

</llo_original>
